<compile_context>
chip_gen: v7x
topology: tpu7x:2x2x1
jax: 0.10.0
libtpu: 0.0.40
codegen_flags: <defaults>
</compile_context>

<pallas_src>
import jax
import jax.numpy as jnp
from jax.experimental import pallas as pl
from jax.experimental.pallas import tpu as pltpu


def _round_up(v, m):
    return (v + m - 1) // m * m


def relation_kernel(x_ref, w1_ref, b1_ref, w2_ref, b2_ref, o_ref):
    # fc1 on the MXU: bf16 x bf16 inputs, f32 accumulation.
    h = jnp.dot(x_ref[...], w1_ref[...], preferred_element_type=jnp.float32)
    # bias + ReLU in f32 on the VPU (b1 is a lane-dense (1, H) row).
    h = jnp.maximum(h + b1_ref[...], 0.0)
    # dropout(p=0.1): identity at inference time (eval mode).
    # TODO(synk): train-mode dropout (RNG masking) is not implemented.
    # fc2 as VPU multiply + XLU lane reduction (avoids an N=1 MXU matmul).
    y = jnp.sum(h * w2_ref[...], axis=-1, keepdims=True)   # (TB, 1) f32
    y = y + b2_ref[0]                                       # SMEM scalar bias
    o_ref[...] = jax.nn.sigmoid(y).astype(o_ref.dtype)


def relation_module(x, w1, b1, w2, b2, *, block_b=256):
    """x: (B, D) f32; w1: (D, H); b1: (H,); w2: (H, 1); b2: (1,) -> (B, 1) f32."""
    B, D = x.shape
    H = w1.shape[1]

    # Batch tile: multiple of 8 sublanes; pad B up to a whole number of tiles.
    TB = min(block_b, _round_up(B, 8))
    Bp = _round_up(B, TB)

    xb = x.astype(jnp.bfloat16)
    if Bp != B:
        xb = jnp.pad(xb, ((0, Bp - B), (0, 0)))
    w1b = w1.astype(jnp.bfloat16)
    b1_row = b1.reshape(1, H).astype(jnp.float32)
    w2_row = w2.reshape(1, H).astype(jnp.float32)      # lane-dense fc2 weights
    b2_sc = b2.reshape(1).astype(jnp.float32)          # SMEM scalar

    grid = (Bp // TB,)

    out = pl.pallas_call(
        relation_kernel,
        out_shape=jax.ShapeDtypeStruct((Bp, 1), jnp.float32),
        grid=grid,
        in_specs=[
            # x: streamed per batch tile (double-buffered by Pallas).
            pl.BlockSpec((TB, D), lambda i: (i, 0)),
            # Weights / biases: constant block index -> VMEM-resident.
            pl.BlockSpec((D, H), lambda i: (0, 0)),
            pl.BlockSpec((1, H), lambda i: (0, 0)),
            pl.BlockSpec((1, H), lambda i: (0, 0)),
            # b2: scalar in SMEM (no padded VMEM tile / vreg wasted).
            pl.BlockSpec(memory_space=pltpu.MemorySpace.SMEM),
        ],
        out_specs=pl.BlockSpec((TB, 1), lambda i: (i, 0)),
        compiler_params=pltpu.CompilerParams(
            # batch tiles are independent -> shard across both TCs on v7x.
            dimension_semantics=("parallel",),
            # Explicit scoped-VMEM budget; tiny footprint, plenty of headroom
            # on v5e (16 MiB default) / v6e / v7x (64 MiB physical).
            vmem_limit_bytes=32 * 1024 * 1024,
        ),
        cost_estimate=pl.CostEstimate(
            flops=2 * Bp * D * H + 3 * Bp * H,
            transcendentals=Bp,
            bytes_accessed=(xb.size * 2 + w1b.size * 2
                            + 4 * (b1_row.size + w2_row.size + b2_sc.size)
                            + Bp * 4),
        ),
    )(xb, w1b, b1_row, w2_row, b2_sc)

    return out[:B] if Bp != B else out


if __name__ == "__main__":
    # Shapes consistent with the module (input_dim=64, hidden_dim=128 default);
    # batch chosen so the grid has >1 tile and the pipeline is exercised.
    B, D, H = 512, 64, 128

    key = jax.random.PRNGKey(0)
    kx, kw1, kb1, kw2, kb2 = jax.random.split(key, 5)

    x = jax.random.normal(kx, (B, D), dtype=jnp.float32)
    # Deterministic synthetic parameters (PyTorch-style uniform init bounds).
    bound1 = 1.0 / (D ** 0.5)
    bound2 = 1.0 / (H ** 0.5)
    w1 = jax.random.uniform(kw1, (D, H), jnp.float32, -bound1, bound1)
    b1 = jax.random.uniform(kb1, (H,), jnp.float32, -bound1, bound1)
    w2 = jax.random.uniform(kw2, (H, 1), jnp.float32, -bound2, bound2)
    b2 = jax.random.uniform(kb2, (1,), jnp.float32, -bound2, bound2)

    out = jax.block_until_ready(relation_module(x, w1, b1, w2, b2, block_b=256))

    # Reference in plain JAX (eval-mode dropout = identity), using the same
    # bf16-rounded x / W1 that the kernel feeds to the MXU.
    xb = x.astype(jnp.bfloat16).astype(jnp.float32)
    w1b = w1.astype(jnp.bfloat16).astype(jnp.float32)
    ref = jax.nn.sigmoid(jnp.maximum(xb @ w1b + b1, 0.0) @ w2 + b2)

    assert out.shape == (B, 1)
    assert jnp.allclose(out, ref, atol=1e-3, rtol=1e-3)

    print("KERNEL_OK")
</pallas_src>

<mosaic_0001>
module attributes {stable_mosaic.version = 11 : i64} {
  func.func @relation_kernel(%arg0: i32, %arg1: memref<256x64xbf16, #tpu.memory_space<vmem>>, %arg2: memref<64x128xbf16, #tpu.memory_space<vmem>>, %arg3: memref<1x128xf32, #tpu.memory_space<vmem>>, %arg4: memref<1x128xf32, #tpu.memory_space<vmem>>, %arg5: memref<1xf32, #tpu.memory_space<smem>>, %arg6: memref<256x1xf32, #tpu.memory_space<vmem>>) attributes {dimension_semantics = [#tpu.dimension_semantics<parallel>], iteration_bounds = array<i64: 2>, scalar_prefetch = 0 : i64, scratch_operands = 0 : i64, tpu.core_type = #tpu.core_type<tc>, window_params = [{transform_indices = @transform_0, window_bounds = array<i64: 256, 64>}, {pipeline_mode = #tpu.pipeline_mode<synchronous>, transform_indices = @transform_1, window_bounds = array<i64: 64, 128>}, {pipeline_mode = #tpu.pipeline_mode<synchronous>, transform_indices = @transform_2, window_bounds = array<i64: 1, 128>}, {pipeline_mode = #tpu.pipeline_mode<synchronous>, transform_indices = @transform_3, window_bounds = array<i64: 1, 128>}, {transform_indices = @transform_4, window_bounds = array<i64: 1>}, {transform_indices = @transform_5, window_bounds = array<i64: 256, 1>}]} {
    %c0 = arith.constant 0 : index
    %c0_0 = arith.constant 0 : index
    %0 = vector.load %arg1[%c0, %c0_0] : memref<256x64xbf16, #tpu.memory_space<vmem>>, vector<256x64xbf16>
    %c0_1 = arith.constant 0 : index
    %c0_2 = arith.constant 0 : index
    %1 = vector.load %arg2[%c0_1, %c0_2] : memref<64x128xbf16, #tpu.memory_space<vmem>>, vector<64x128xbf16>
    %cst = arith.constant dense<0.000000e+00> : vector<256x128xf32>
    %2 = tpu.matmul %0, %1, %cst {dimension_numbers = #tpu.dot_dimension_numbers<[1], [0], [0], [1], [0, 0, 1, 1], [], []>} : vector<256x64xbf16>, vector<64x128xbf16>, vector<256x128xf32> -> vector<256x128xf32>
    %c0_3 = arith.constant 0 : index
    %c0_4 = arith.constant 0 : index
    %3 = vector.load %arg3[%c0_3, %c0_4] : memref<1x128xf32, #tpu.memory_space<vmem>>, vector<1x128xf32>
    %4 = vector.broadcast %3 : vector<1x128xf32> to vector<256x128xf32>
    %5 = arith.addf %2, %4 : vector<256x128xf32>
    %cst_5 = arith.constant 0.000000e+00 : f32
    %6 = vector.broadcast %cst_5 : f32 to vector<256x128xf32>
    %7 = arith.maximumf %5, %6 : vector<256x128xf32>
    %c0_6 = arith.constant 0 : index
    %c0_7 = arith.constant 0 : index
    %8 = vector.load %arg4[%c0_6, %c0_7] : memref<1x128xf32, #tpu.memory_space<vmem>>, vector<1x128xf32>
    %9 = vector.broadcast %8 : vector<1x128xf32> to vector<256x128xf32>
    %10 = arith.mulf %7, %9 : vector<256x128xf32>
    %cst_8 = arith.constant dense<0.000000e+00> : vector<256xf32>
    %11 = vector.multi_reduction <add>, %10, %cst_8 [1] : vector<256x128xf32> to vector<256xf32>
    %12 = vector.shape_cast %11 : vector<256xf32> to vector<256x1xf32>
    %c0_9 = arith.constant 0 : index
    %13 = memref.load %arg5[%c0_9] : memref<1xf32, #tpu.memory_space<smem>>
    %14 = vector.broadcast %13 : f32 to vector<256x1xf32>
    %15 = arith.addf %12, %14 : vector<256x1xf32>
    %16 = arith.negf %15 : vector<256x1xf32>
    %17 = math.exp %16 : vector<256x1xf32>
    %cst_10 = arith.constant 1.000000e+00 : f32
    %18 = vector.broadcast %cst_10 : f32 to vector<256x1xf32>
    %19 = arith.addf %18, %17 : vector<256x1xf32>
    %20 = arith.divf %18, %19 : vector<256x1xf32>
    %c0_11 = arith.constant 0 : index
    %c0_12 = arith.constant 0 : index
    %21 = vector.load %arg6[%c0_11, %c0_12] : memref<256x1xf32, #tpu.memory_space<vmem>>, vector<256x1xf32>
    tpu.vector_store %arg6[%c0_11, %c0_12], %20 {strides = array<i32>} : memref<256x1xf32, #tpu.memory_space<vmem>>, vector<256x1xf32>,
    return
  }
  func.func @transform_0(%arg0: i32) -> (i32, i32) {
    %c0_i32 = arith.constant 0 : i32
    %c0_i32_0 = arith.constant 0 : i32
    return %arg0, %c0_i32 : i32, i32
  }
  func.func @transform_1(%arg0: i32) -> (i32, i32) {
    %c0_i32 = arith.constant 0 : i32
    %c0_i32_0 = arith.constant 0 : i32
    %c0_i32_1 = arith.constant 0 : i32
    return %c0_i32, %c0_i32_0 : i32, i32
  }
  func.func @transform_2(%arg0: i32) -> (i32, i32) {
    %c0_i32 = arith.constant 0 : i32
    %c0_i32_0 = arith.constant 0 : i32
    %c0_i32_1 = arith.constant 0 : i32
    return %c0_i32, %c0_i32_0 : i32, i32
  }
  func.func @transform_3(%arg0: i32) -> (i32, i32) {
    %c0_i32 = arith.constant 0 : i32
    %c0_i32_0 = arith.constant 0 : i32
    %c0_i32_1 = arith.constant 0 : i32
    return %c0_i32, %c0_i32_0 : i32, i32
  }
  func.func @transform_4(%arg0: i32) -> i32 {
    %c0_i32 = arith.constant 0 : i32
    %c0_i32_0 = arith.constant 0 : i32
    return %c0_i32 : i32
  }
  func.func @transform_5(%arg0: i32) -> (i32, i32) {
    %c0_i32 = arith.constant 0 : i32
    %c0_i32_0 = arith.constant 0 : i32
    return %arg0, %c0_i32 : i32, i32
  }
}

</mosaic_0001>

<llo_original>
// kernel: tpu_custom_call.1
$region0: #{tpu_custom_call.1}
  #allocation0 [shape = 'u32[]', space=smem, size = 0x4, offset = 0x4, fixed_abs, tag = 'smem constant byte address 0x4 - core index']
  #allocation1 [shape = 'u32[144,128]{1,0:T(1,128)}', space=vmem, size = 0x12000, scoped, tag = 'internal scratch']
  #allocation2 [shape = 'f32[1]{0:T(128)S(6)}', space=smem, size = 0x200, scoped, tag = 'scoped memory for tpu_custom_call.1']
  %s0 = inlined_call_operand.vmem [shape: bf16[512,64], index: 0, kind: input, shape index: {}]
  %s1 = inlined_call_operand.vmem [shape: bf16[64,128], index: 1, kind: input, shape index: {}]
  %s2 = inlined_call_operand.vmem [shape: f32[1,128], index: 2, kind: input, shape index: {}]
  %s3 = inlined_call_operand.vmem [shape: f32[1,128], index: 3, kind: input, shape index: {}]
  %s4 = inlined_call_operand.<no memory space> [shape: f32[1], index: 4, kind: input, shape index: {}]
  %s5 = inlined_call_operand.vmem [shape: f32[512,1], index: 5, kind: output, shape index: {}]
  %s6 = sld [smem:[#allocation0]]
  $region53: #{tpu_custom_call.1} parent=0
    _
  %s8 = ssub.s32 1, %s6
  %s9 = scalar_select 0, %s8, %s6
  %10 = sst [smem:[#allocation2]] %s4
  loop: start=0, step=1, limit=4
  $region2: #{tpu_custom_call.1} parent=0 // loop_pre_header
    _
  $region3: #{tpu_custom_call.1} parent=0 // loop_header
    %s12 = sphi 0, %s16
    %p13 = scmp.ge.s32.totalorder %s12, 4
    %s22 = sphi 0, %s24
    %s25 = sphi 0, %s22
    %s26 = sphi 0, %s25
    %s42 = sphi 0, %s26
    %s46 = sphi 0, %s46
    %s48 = sphi 0, %s46
    %s49 = sphi 0, %s48
    %s63 = sphi 0, %s49
    %s67 = sphi 0, %s67
    %s69 = sphi 0, %s67
    %s70 = sphi 0, %s69
    %s84 = sphi 0, %s70
    %s88 = sphi 0, %s88
    %s90 = sphi 0, %s88
    %s91 = sphi 0, %s90
    %s105 = sphi 0, %s91
    %s109 = sphi 0, %s109
    %s111 = sphi 0, %s109
    %s112 = sphi 0, %s111
    %s126 = sphi 0, %s112
    %s132 = sphi 0, %s134
    %s135 = sphi 0, %s132
    %s136 = sphi 0, %s135
    %s152 = sphi 0, %s136
  $region4: #{tpu_custom_call.1} parent=0 // loop_header_branch
    %15 = sbr.rel (%p13) target = $region8
  $region5: #{tpu_custom_call.1} parent=0 // loop_body
    %s17 = ssub.s32 %s12, 1
    %s18 = ssub.s32 %s12, 2
    %s19 = sadd.s32 %s12, 1
    %s20 = ssub.s32 %s12, %s19
    %p21 = scmp.eq.s32.totalorder %s20, 0
    %s23 = sadd.s32 %s22, 1
    %s24 = scalar_select %p21, %s22, %s23
    %p27 = pneg %p21
    %p28 = scmp.eq.s32.totalorder %s12, 1
    %p29 = por %p27, %p28
    %p30 = scmp.ne.s32.totalorder %s22, %s25
    %p31 = scmp.eq.s32.totalorder %s12, 0
    %p32 = por %p30, %p31
    %p33 = scmp.ne.s32.totalorder %s22, %s25
    %p34 = scmp.eq.s32.totalorder %s17, 1
    %p35 = por %p33, %p34
    %p36 = scmp.ne.s32.totalorder %s25, %s26
    %p37 = scmp.eq.s32.totalorder %s17, 0
    %p38 = por %p36, %p37
    %p39 = scmp.ne.s32.totalorder %s25, %s26
    %p40 = scmp.eq.s32.totalorder %s18, 1
    %p41 = por %p39, %p40
    %p43 = scmp.ne.s32.totalorder %s26, %s42
    %p44 = scmp.eq.s32.totalorder %s18, 0
    %p45 = por %p43, %p44
    %s47 = sadd.s32 %s46, 1
    %p50 = scmp.eq.s32.totalorder %s12, 1
    %p51 = scmp.ne.s32.totalorder %s46, %s48
    %p52 = scmp.eq.s32.totalorder %s12, 0
    %p53 = por %p51, %p52
    %p54 = scmp.ne.s32.totalorder %s46, %s48
    %p55 = scmp.eq.s32.totalorder %s17, 1
    %p56 = por %p54, %p55
    %p57 = scmp.ne.s32.totalorder %s48, %s49
    %p58 = scmp.eq.s32.totalorder %s17, 0
    %p59 = por %p57, %p58
    %p60 = scmp.ne.s32.totalorder %s48, %s49
    %p61 = scmp.eq.s32.totalorder %s18, 1
    %p62 = por %p60, %p61
    %p64 = scmp.ne.s32.totalorder %s49, %s63
    %p65 = scmp.eq.s32.totalorder %s18, 0
    %p66 = por %p64, %p65
    %s68 = sadd.s32 %s67, 1
    %p71 = scmp.eq.s32.totalorder %s12, 1
    %p72 = scmp.ne.s32.totalorder %s67, %s69
    %p73 = scmp.eq.s32.totalorder %s12, 0
    %p74 = por %p72, %p73
    %p75 = scmp.ne.s32.totalorder %s67, %s69
    %p76 = scmp.eq.s32.totalorder %s17, 1
    %p77 = por %p75, %p76
    %p78 = scmp.ne.s32.totalorder %s69, %s70
    %p79 = scmp.eq.s32.totalorder %s17, 0
    %p80 = por %p78, %p79
    %p81 = scmp.ne.s32.totalorder %s69, %s70
    %p82 = scmp.eq.s32.totalorder %s18, 1
    %p83 = por %p81, %p82
    %p85 = scmp.ne.s32.totalorder %s70, %s84
    %p86 = scmp.eq.s32.totalorder %s18, 0
    %p87 = por %p85, %p86
    %s89 = sadd.s32 %s88, 1
    %p92 = scmp.eq.s32.totalorder %s12, 1
    %p93 = scmp.ne.s32.totalorder %s88, %s90
    %p94 = scmp.eq.s32.totalorder %s12, 0
    %p95 = por %p93, %p94
    %p96 = scmp.ne.s32.totalorder %s88, %s90
    %p97 = scmp.eq.s32.totalorder %s17, 1
    %p98 = por %p96, %p97
    %p99 = scmp.ne.s32.totalorder %s90, %s91
    %p100 = scmp.eq.s32.totalorder %s17, 0
    %p101 = por %p99, %p100
    %p102 = scmp.ne.s32.totalorder %s90, %s91
    %p103 = scmp.eq.s32.totalorder %s18, 1
    %p104 = por %p102, %p103
    %p106 = scmp.ne.s32.totalorder %s91, %s105
    %p107 = scmp.eq.s32.totalorder %s18, 0
    %p108 = por %p106, %p107
    %s110 = sadd.s32 %s109, 1
    %p113 = scmp.eq.s32.totalorder %s12, 1
    %p114 = scmp.ne.s32.totalorder %s109, %s111
    %p115 = scmp.eq.s32.totalorder %s12, 0
    %p116 = por %p114, %p115
    %p117 = scmp.ne.s32.totalorder %s109, %s111
    %p118 = scmp.eq.s32.totalorder %s17, 1
    %p119 = por %p117, %p118
    %p120 = scmp.ne.s32.totalorder %s111, %s112
    %p121 = scmp.eq.s32.totalorder %s17, 0
    %p122 = por %p120, %p121
    %p123 = scmp.ne.s32.totalorder %s111, %s112
    %p124 = scmp.eq.s32.totalorder %s18, 1
    %p125 = por %p123, %p124
    %p127 = scmp.ne.s32.totalorder %s112, %s126
    %p128 = scmp.eq.s32.totalorder %s18, 0
    %p129 = por %p127, %p128
    %s130 = ssub.s32 %s12, %s19
    %p131 = scmp.eq.s32.totalorder %s130, 0
    %s133 = sadd.s32 %s132, 1
    %s134 = scalar_select %p131, %s132, %s133
    %p137 = pneg %p131
    %p138 = scmp.eq.s32.totalorder %s12, 1
    %p139 = por %p137, %p138
    %p140 = scmp.ne.s32.totalorder %s132, %s135
    %p141 = scmp.eq.s32.totalorder %s12, 0
    %p142 = por %p140, %p141
    %p143 = scmp.ne.s32.totalorder %s132, %s135
    %p144 = scmp.eq.s32.totalorder %s17, 1
    %p145 = por %p143, %p144
    %p146 = scmp.ne.s32.totalorder %s135, %s136
    %p147 = scmp.eq.s32.totalorder %s17, 0
    %p148 = por %p146, %p147
    %p149 = scmp.ne.s32.totalorder %s135, %s136
    %p150 = scmp.eq.s32.totalorder %s18, 1
    %p151 = por %p149, %p150
    %p153 = scmp.ne.s32.totalorder %s136, %s152
    %p154 = scmp.eq.s32.totalorder %s18, 0
    %p155 = por %p153, %p154
    %p156 = scmp.le.s32.totalorder 1, %s12
    %p157 = scmp.lt.s32.totalorder %s12, 3
    %p158 = pnand %p156, %p157
    %p159 = pneg %p158
    // Predicated region
    $region9: #{tpu_custom_call.1} parent=5 // pred_check
      _
    $region10: #{tpu_custom_call.1} parent=5 // pred_check_branch
      %161 = sbr.rel (%p158) target = $region12
    $region11: #{tpu_custom_call.1} parent=5 // pred_region
      %s162 = ssub.s32 %s12, 1
      // Predicated region
      $region13: #{tpu_custom_call.1} parent=11 // pred_check
        %p163 = pneg %p59
      $region14: #{tpu_custom_call.1} parent=11 // pred_check_branch
        %165 = sbr.rel (%p163) target = $region16
      $region15: #{tpu_custom_call.1} parent=11 // pred_region
        _
      $region16: #{tpu_custom_call.1} parent=11 // pred_fallthru
        _
      // Predicated region
      $region17: #{tpu_custom_call.1} parent=11 // pred_check
        %p166 = pneg %p80
      $region18: #{tpu_custom_call.1} parent=11 // pred_check_branch
        %168 = sbr.rel (%p166) target = $region20
      $region19: #{tpu_custom_call.1} parent=11 // pred_region
        _
      $region20: #{tpu_custom_call.1} parent=11 // pred_fallthru
        _
      // Predicated region
      $region21: #{tpu_custom_call.1} parent=11 // pred_check
        %p169 = pneg %p101
      $region22: #{tpu_custom_call.1} parent=11 // pred_check_branch
        %171 = sbr.rel (%p169) target = $region24
      $region23: #{tpu_custom_call.1} parent=11 // pred_region
        _
      $region24: #{tpu_custom_call.1} parent=11 // pred_fallthru
        _
      // Predicated region
      $region25: #{tpu_custom_call.1} parent=11 // pred_check
        %p172 = pneg %p122
      $region26: #{tpu_custom_call.1} parent=11 // pred_check_branch
        %174 = sbr.rel (%p172) target = $region28
      $region27: #{tpu_custom_call.1} parent=11 // pred_region
        _
      $region28: #{tpu_custom_call.1} parent=11 // pred_fallthru
        _
    $region12: #{tpu_custom_call.1} parent=5 // pred_fallthru
      _
    %p175 = scmp.lt.s32.totalorder %s12, 2
    // Predicated region
    $region29: #{tpu_custom_call.1} parent=5 // pred_check
      %p176 = pneg %p175
    $region30: #{tpu_custom_call.1} parent=5 // pred_check_branch
      %178 = sbr.rel (%p176) target = $region32
    $region31: #{tpu_custom_call.1} parent=5 // pred_region
      // Predicated region
      $region33: #{tpu_custom_call.1} parent=31 // pred_check
        %p179 = pneg %p32
      $region34: #{tpu_custom_call.1} parent=31 // pred_check_branch
        %181 = sbr.rel (%p179) target = $region36
      $region35: #{tpu_custom_call.1} parent=31 // pred_region
        %s182 = smul.u32 32, %s12
        %p183 = scmp.lt.s32.totalorder %s182, 63
        %s184 = scalar_select %p183, %s182, 63
        %s185 = smul.addr %s184, 4
        %s186 = scalar_lea.vmem %s0, %s185
        %s187 = smul.u32 32, %s12
      $region36: #{tpu_custom_call.1} parent=31 // pred_fallthru
        _
    $region32: #{tpu_custom_call.1} parent=5 // pred_fallthru
      _
    %p188 = scmp.le.s32.totalorder 1, %s12
    %p189 = scmp.lt.s32.totalorder %s12, 3
    %p190 = pnand %p188, %p189
    %p191 = pneg %p190
    // Predicated region
    $region37: #{tpu_custom_call.1} parent=5 // pred_check
      _
    $region38: #{tpu_custom_call.1} parent=5 // pred_check_branch
      %193 = sbr.rel (%p190) target = $region40
    $region39: #{tpu_custom_call.1} parent=5 // pred_region
      %s194 = ssub.s32 %s12, 1
      %s195 = smul.u32 32, %s17
      %p196 = scmp.lt.s32.totalorder %s195, 63
      %s197 = scalar_select %p196, %s195, 63
      %s198 = smul.addr %s197, 4
      %s199 = scalar_lea.vmem %s0, %s198
      %p200 = pneg %p38
      %p201 = pneg %p35
      %p202 = pneg %p59
      %p203 = pneg %p56
      %p204 = pneg %p80
      %p205 = pneg %p77
      %p206 = pneg %p101
      %p207 = pneg %p98
      %p208 = pneg %p122
      %p209 = pneg %p119
      %p210 = pneg %p148
      %p211 = pneg %p145
      %s212 = smul.u32 32, %s17
      %p213 = scmp.lt.s32.totalorder %s212, 63
      %s214 = scalar_select %p213, %s212, 63
      %s215 = smul.addr %s214, 8
      %s216 = scalar_lea.vmem %s5, %s215
      %s217 = smul.u32 32, %s17
      %p218 = scmp.lt.s32.totalorder %s217, 63
      %s219 = scalar_select %p218, %s217, 63
      %s220 = smul.addr %s219, 4
      %s221 = scalar_lea.vmem %s0, %s220
      %s222 = smul.u32 32, %s17
      %s223 = smul.u32 32, %s17
      %p224 = scmp.lt.s32.totalorder %s223, 63
      %s225 = scalar_select %p224, %s223, 63
      %s226 = smul.addr %s225, 8
      %s227 = scalar_lea.vmem %s5, %s226
      %s228 = smul.u32 32, %s17
      %v230 = vld [vmem:[%s221] sm:$0xf]
      %v231 = vld [vmem:[%s221 + $0x4] sm:$0xf]
      %v232 = vld [vmem:[%s221 + $0x8] sm:$0xf]
      %v233 = vld [vmem:[%s221 + $0xc] sm:$0xf]
      %v234 = vld [vmem:[%s221 + $0x10] sm:$0xf]
      %v235 = vld [vmem:[%s221 + $0x14] sm:$0xf]
      %v236 = vld [vmem:[%s221 + $0x18] sm:$0xf]
      %v237 = vld [vmem:[%s221 + $0x1c] sm:$0xf]
      %v238 = vld [vmem:[%s221 + $0x20] sm:$0xf]
      %v239 = vld [vmem:[%s221 + $0x24] sm:$0xf]
      %v240 = vld [vmem:[%s221 + $0x28] sm:$0xf]
      %v241 = vld [vmem:[%s221 + $0x2c] sm:$0xf]
      %v242 = vld [vmem:[%s221 + $0x30] sm:$0xf]
      %v243 = vld [vmem:[%s221 + $0x34] sm:$0xf]
      %v244 = vld [vmem:[%s221 + $0x38] sm:$0xf]
      %v245 = vld [vmem:[%s221 + $0x3c] sm:$0xf]
      %v246 = vld [vmem:[%s221 + $0x40] sm:$0xf]
      %v247 = vld [vmem:[%s221 + $0x44] sm:$0xf]
      %v248 = vld [vmem:[%s221 + $0x48] sm:$0xf]
      %v249 = vld [vmem:[%s221 + $0x4c] sm:$0xf]
      %v250 = vld [vmem:[%s221 + $0x50] sm:$0xf]
      %v251 = vld [vmem:[%s221 + $0x54] sm:$0xf]
      %v252 = vld [vmem:[%s221 + $0x58] sm:$0xf]
      %v253 = vld [vmem:[%s221 + $0x5c] sm:$0xf]
      %v254 = vld [vmem:[%s221 + $0x60] sm:$0xf]
      %v255 = vld [vmem:[%s221 + $0x64] sm:$0xf]
      %v256 = vld [vmem:[%s221 + $0x68] sm:$0xf]
      %v257 = vld [vmem:[%s221 + $0x6c] sm:$0xf]
      %v258 = vld [vmem:[%s221 + $0x70] sm:$0xf]
      %v259 = vld [vmem:[%s221 + $0x74] sm:$0xf]
      %v260 = vld [vmem:[%s221 + $0x78] sm:$0xf]
      %v261 = vld [vmem:[%s221 + $0x7c] sm:$0xf]
      %v262 = vld [vmem:[%s1] sm:$0xf]
      %v263 = vld [vmem:[%s1 + $0x4] sm:$0xf]
      %v264 = vld [vmem:[%s1 + $0x8] sm:$0xf]
      %v265 = vld [vmem:[%s1 + $0xc] sm:$0xf]
      %v266 = vld [vmem:[%s1 + $0x10] sm:$0xf]
      %v267 = vld [vmem:[%s1 + $0x14] sm:$0xf]
      %v268 = vld [vmem:[%s1 + $0x18] sm:$0xf]
      %v269 = vld [vmem:[%s1 + $0x1c] sm:$0xf]
      %v270 = vld [vmem:[%s2] sm:$0x1]
      %v272 = vlaneseq
      %v273 = vshrl.u32 %v272, 7
      %v274 = vsub.s32 0, %v273
      %v275 = vrot.slane %v270, %v274
      %v309 = vunpack.c.l.b16 %v230
      %v310 = vunpack.c.l.b16 %v231
      %v311 = vunpack.c.l.b16 %v232
      %v312 = vunpack.c.l.b16 %v233
      %v313 = vunpack.c.l.b16 %v234
      %v314 = vunpack.c.l.b16 %v235
      %v315 = vunpack.c.l.b16 %v236
      %v316 = vunpack.c.l.b16 %v237
      %v317 = vunpack.c.l.b16 %v238
      %v318 = vunpack.c.l.b16 %v239
      %v319 = vunpack.c.l.b16 %v240
      %v320 = vunpack.c.l.b16 %v241
      %v321 = vunpack.c.l.b16 %v242
      %v322 = vunpack.c.l.b16 %v243
      %v323 = vunpack.c.l.b16 %v244
      %v324 = vunpack.c.l.b16 %v245
      %v325 = vunpack.c.l.b16 %v246
      %v326 = vunpack.c.l.b16 %v247
      %v327 = vunpack.c.l.b16 %v248
      %v328 = vunpack.c.l.b16 %v249
      %v329 = vunpack.c.l.b16 %v250
      %v330 = vunpack.c.l.b16 %v251
      %v331 = vunpack.c.l.b16 %v252
      %v332 = vunpack.c.l.b16 %v253
      %v333 = vunpack.c.l.b16 %v254
      %v334 = vunpack.c.l.b16 %v255
      %v335 = vunpack.c.l.b16 %v256
      %v336 = vunpack.c.l.b16 %v257
      %v337 = vunpack.c.l.b16 %v258
      %v338 = vunpack.c.l.b16 %v259
      %v339 = vunpack.c.l.b16 %v260
      %v340 = vunpack.c.l.b16 %v261
      %v341 = vpack.c.b16 %v310, %v309
      %v342 = vpack.c.b16 %v312, %v311
      %v343 = vpack.c.b16 %v314, %v313
      %v344 = vpack.c.b16 %v316, %v315
      %v345 = vpack.c.b16 %v318, %v317
      %v346 = vpack.c.b16 %v320, %v319
      %v347 = vpack.c.b16 %v322, %v321
      %v348 = vpack.c.b16 %v324, %v323
      %v349 = vpack.c.b16 %v326, %v325
      %v350 = vpack.c.b16 %v328, %v327
      %v351 = vpack.c.b16 %v330, %v329
      %v352 = vpack.c.b16 %v332, %v331
      %v353 = vpack.c.b16 %v334, %v333
      %v354 = vpack.c.b16 %v336, %v335
      %v355 = vpack.c.b16 %v338, %v337
      %v356 = vpack.c.b16 %v340, %v339
      %v365 = vunpack.c.l.b16 %v262
      %v366 = vunpack.c.l.b16 %v263
      %v367 = vunpack.c.l.b16 %v264
      %v368 = vunpack.c.l.b16 %v265
      %v369 = vunpack.c.l.b16 %v266
      %v370 = vunpack.c.l.b16 %v267
      %v371 = vunpack.c.l.b16 %v268
      %v372 = vunpack.c.l.b16 %v269
      %v373 = vpack.c.b16 %v366, %v365
      %v374 = vpack.c.b16 %v368, %v367
      %v375 = vpack.c.b16 %v370, %v369
      %v376 = vpack.c.b16 %v372, %v371
      %vm381 = vcmask 523264
      %v383 = vsel %vm381, %v341, 0
      %v386 = vsel %vm381, %v342, 0
      %v389 = vsel %vm381, %v343, 0
      %v392 = vsel %vm381, %v344, 0
      %v395 = vsel %vm381, %v345, 0
      %v398 = vsel %vm381, %v346, 0
      %v401 = vsel %vm381, %v347, 0
      %v404 = vsel %vm381, %v348, 0
      %v407 = vsel %vm381, %v349, 0
      %v410 = vsel %vm381, %v350, 0
      %v413 = vsel %vm381, %v351, 0
      %v416 = vsel %vm381, %v352, 0
      %v419 = vsel %vm381, %v353, 0
      %v422 = vsel %vm381, %v354, 0
      %v425 = vsel %vm381, %v355, 0
      %v428 = vsel %vm381, %v356, 0
      %430 = vmatprep.subr.bf16.mxu0 0
      %431 = vmatpush1.bf16.msra.mxu0 %v373
      %432 = vmatprep.subr.bf16.mxu0 0
      %433 = vmatpush1.bf16.msra.mxu0 %v374
      %434 = vmatprep.subr.bf16.mxu0 0
      %435 = vmatpush1.bf16.msra.mxu0 %v375
      %436 = vmatprep.subr.bf16.mxu0 0
      %437 = vmatpush1.bf16.msra.mxu0 %v376
      %438 = vmatprep.subr.bf16.mxu0 0
      %439 = vmatpush1.bf16.msra.mxu0 0
      %440 = vmatprep.subr.bf16.mxu0 0
      %441 = vmatpush1.bf16.msra.mxu0 0
      %442 = vmatprep.subr.bf16.mxu0 0
      %443 = vmatpush1.bf16.msra.mxu0 0
      %444 = vmatprep.subr.bf16.mxu0 0
      %445 = vmatpush1.bf16.msra.mxu0 0
      %446 = vmatprep.subr.bf16.mxu0 0
      %447 = vmatpush1.bf16.msra.mxu0 0
      %448 = vmatprep.subr.bf16.mxu0 0
      %449 = vmatpush1.bf16.msra.mxu0 0
      %450 = vmatprep.subr.bf16.mxu0 0
      %451 = vmatpush1.bf16.msra.mxu0 0
      %452 = vmatprep.subr.bf16.mxu0 0
      %453 = vmatpush1.bf16.msra.mxu0 0
      %454 = vmatprep.subr.bf16.mxu0 0
      %455 = vmatpush1.bf16.msra.mxu0 0
      %456 = vmatprep.subr.bf16.mxu0 0
      %457 = vmatpush1.bf16.msra.mxu0 0
      %458 = vmatprep.subr.bf16.mxu0 0
      %459 = vmatpush1.bf16.msra.mxu0 0
      %460 = vmatprep.subr.bf16.mxu0 0
      %461 = vmatpush1.bf16.msra.mxu0 0
      %462 = vmatprep.mubr.bf16.mxu0 0
      %463 = vmatmul.mubr.bf16.gmra.mrb[0].mxu0 %v383
      %v464 = vpop.f32.mrb[0].mxu0
      %v465 = vadd.f32 %v275, %v464
      %v466 = vpop.f32.mrb[0].mxu0
      %v467 = vpop.f32.mrb[0].mxu0
      %v468 = vadd.f32 %v275, %v467
      %v469 = vpop.f32.mrb[0].mxu0
      %470 = vmatprep.mubr.bf16.mxu0 0
      %471 = vmatmul.mubr.bf16.gmra.mrb[0].mxu0 %v386
      %v472 = vpop.f32.mrb[0].mxu0
      %v473 = vadd.f32 %v275, %v472
      %v474 = vpop.f32.mrb[0].mxu0
      %v475 = vpop.f32.mrb[0].mxu0
      %v476 = vadd.f32 %v275, %v475
      %v477 = vpop.f32.mrb[0].mxu0
      %478 = vmatprep.mubr.bf16.mxu0 0
      %479 = vmatmul.mubr.bf16.gmra.mrb[0].mxu0 %v389
      %v480 = vpop.f32.mrb[0].mxu0
      %v481 = vadd.f32 %v275, %v480
      %v482 = vpop.f32.mrb[0].mxu0
      %v483 = vpop.f32.mrb[0].mxu0
      %v484 = vadd.f32 %v275, %v483
      %v485 = vpop.f32.mrb[0].mxu0
      %486 = vmatprep.mubr.bf16.mxu0 0
      %487 = vmatmul.mubr.bf16.gmra.mrb[0].mxu0 %v392
      %v488 = vpop.f32.mrb[0].mxu0
      %v489 = vadd.f32 %v275, %v488
      %v490 = vpop.f32.mrb[0].mxu0
      %v491 = vpop.f32.mrb[0].mxu0
      %v492 = vadd.f32 %v275, %v491
      %v493 = vpop.f32.mrb[0].mxu0
      %494 = vmatprep.mubr.bf16.mxu0 0
      %495 = vmatmul.mubr.bf16.gmra.mrb[0].mxu0 %v395
      %v496 = vpop.f32.mrb[0].mxu0
      %v497 = vadd.f32 %v275, %v496
      %v498 = vpop.f32.mrb[0].mxu0
      %v499 = vpop.f32.mrb[0].mxu0
      %v500 = vadd.f32 %v275, %v499
      %v501 = vpop.f32.mrb[0].mxu0
      %502 = vmatprep.mubr.bf16.mxu0 0
      %503 = vmatmul.mubr.bf16.gmra.mrb[0].mxu0 %v398
      %v504 = vpop.f32.mrb[0].mxu0
      %v505 = vadd.f32 %v275, %v504
      %v506 = vpop.f32.mrb[0].mxu0
      %v507 = vpop.f32.mrb[0].mxu0
      %v508 = vadd.f32 %v275, %v507
      %v509 = vpop.f32.mrb[0].mxu0
      %510 = vmatprep.mubr.bf16.mxu0 0
      %511 = vmatmul.mubr.bf16.gmra.mrb[0].mxu0 %v401
      %v512 = vpop.f32.mrb[0].mxu0
      %v513 = vadd.f32 %v275, %v512
      %v514 = vpop.f32.mrb[0].mxu0
      %v515 = vpop.f32.mrb[0].mxu0
      %v516 = vadd.f32 %v275, %v515
      %v517 = vpop.f32.mrb[0].mxu0
      %518 = vmatprep.mubr.bf16.mxu0 0
      %519 = vmatmul.mubr.bf16.gmra.mrb[0].mxu0 %v404
      %v520 = vpop.f32.mrb[0].mxu0
      %v521 = vadd.f32 %v275, %v520
      %v522 = vpop.f32.mrb[0].mxu0
      %v523 = vpop.f32.mrb[0].mxu0
      %v524 = vadd.f32 %v275, %v523
      %v525 = vpop.f32.mrb[0].mxu0
      %526 = vmatprep.mubr.bf16.mxu0 0
      %527 = vmatmul.mubr.bf16.gmra.mrb[0].mxu0 %v407
      %v528 = vpop.f32.mrb[0].mxu0
      %v529 = vadd.f32 %v275, %v528
      %v530 = vpop.f32.mrb[0].mxu0
      %v531 = vpop.f32.mrb[0].mxu0
      %v532 = vadd.f32 %v275, %v531
      %v533 = vpop.f32.mrb[0].mxu0
      %534 = vmatprep.mubr.bf16.mxu0 0
      %535 = vmatmul.mubr.bf16.gmra.mrb[0].mxu0 %v410
      %v536 = vpop.f32.mrb[0].mxu0
      %v537 = vadd.f32 %v275, %v536
      %v538 = vpop.f32.mrb[0].mxu0
      %v539 = vpop.f32.mrb[0].mxu0
      %v540 = vadd.f32 %v275, %v539
      %v541 = vpop.f32.mrb[0].mxu0
      %542 = vmatprep.mubr.bf16.mxu0 0
      %543 = vmatmul.mubr.bf16.gmra.mrb[0].mxu0 %v413
      %v544 = vpop.f32.mrb[0].mxu0
      %v545 = vadd.f32 %v275, %v544
      %v546 = vpop.f32.mrb[0].mxu0
      %v547 = vpop.f32.mrb[0].mxu0
      %v548 = vadd.f32 %v275, %v547
      %v549 = vpop.f32.mrb[0].mxu0
      %550 = vmatprep.mubr.bf16.mxu0 0
      %551 = vmatmul.mubr.bf16.gmra.mrb[0].mxu0 %v416
      %v552 = vpop.f32.mrb[0].mxu0
      %v553 = vadd.f32 %v275, %v552
      %v554 = vpop.f32.mrb[0].mxu0
      %v555 = vpop.f32.mrb[0].mxu0
      %v556 = vadd.f32 %v275, %v555
      %v557 = vpop.f32.mrb[0].mxu0
      %558 = vmatprep.mubr.bf16.mxu0 0
      %559 = vmatmul.mubr.bf16.gmra.mrb[0].mxu0 %v419
      %v560 = vpop.f32.mrb[0].mxu0
      %v561 = vadd.f32 %v275, %v560
      %v562 = vpop.f32.mrb[0].mxu0
      %v563 = vpop.f32.mrb[0].mxu0
      %v564 = vadd.f32 %v275, %v563
      %v565 = vpop.f32.mrb[0].mxu0
      %566 = vmatprep.mubr.bf16.mxu0 0
      %567 = vmatmul.mubr.bf16.gmra.mrb[0].mxu0 %v422
      %v568 = vpop.f32.mrb[0].mxu0
      %v569 = vadd.f32 %v275, %v568
      %v570 = vpop.f32.mrb[0].mxu0
      %v571 = vpop.f32.mrb[0].mxu0
      %v572 = vadd.f32 %v275, %v571
      %v573 = vpop.f32.mrb[0].mxu0
      %574 = vmatprep.mubr.bf16.mxu0 0
      %575 = vmatmul.mubr.bf16.gmra.mrb[0].mxu0 %v425
      %v576 = vpop.f32.mrb[0].mxu0
      %v577 = vadd.f32 %v275, %v576
      %v578 = vpop.f32.mrb[0].mxu0
      %v579 = vpop.f32.mrb[0].mxu0
      %v580 = vadd.f32 %v275, %v579
      %v581 = vpop.f32.mrb[0].mxu0
      %582 = vmatprep.mubr.bf16.mxu0 0
      %583 = vmatmul.mubr.bf16.gmra.mrb[0].mxu0 %v428
      %v584 = vpop.f32.mrb[0].mxu0
      %v585 = vadd.f32 %v275, %v584
      %v586 = vpop.f32.mrb[0].mxu0
      %v587 = vpop.f32.mrb[0].mxu0
      %v588 = vadd.f32 %v275, %v587
      %v589 = vpop.f32.mrb[0].mxu0
      %590 = vdwg.mxu0
      %v591 = vmax.f32 %v465, 0.0
      %v592 = vmax.f32 %v468, 0.0
      %v593 = vmax.f32 %v473, 0.0
      %v594 = vmax.f32 %v476, 0.0
      %v595 = vmax.f32 %v481, 0.0
      %v596 = vmax.f32 %v484, 0.0
      %v597 = vmax.f32 %v489, 0.0
      %v598 = vmax.f32 %v492, 0.0
      %v599 = vmax.f32 %v497, 0.0
      %v600 = vmax.f32 %v500, 0.0
      %v601 = vmax.f32 %v505, 0.0
      %v602 = vmax.f32 %v508, 0.0
      %v603 = vmax.f32 %v513, 0.0
      %v604 = vmax.f32 %v516, 0.0
      %v605 = vmax.f32 %v521, 0.0
      %v606 = vmax.f32 %v524, 0.0
      %v607 = vmax.f32 %v529, 0.0
      %v608 = vmax.f32 %v532, 0.0
      %v609 = vmax.f32 %v537, 0.0
      %v610 = vmax.f32 %v540, 0.0
      %v611 = vmax.f32 %v545, 0.0
      %v612 = vmax.f32 %v548, 0.0
      %v613 = vmax.f32 %v553, 0.0
      %v614 = vmax.f32 %v556, 0.0
      %v615 = vmax.f32 %v561, 0.0
      %v616 = vmax.f32 %v564, 0.0
      %v617 = vmax.f32 %v569, 0.0
      %v618 = vmax.f32 %v572, 0.0
      %v619 = vmax.f32 %v577, 0.0
      %v620 = vmax.f32 %v580, 0.0
      %v621 = vmax.f32 %v585, 0.0
      %v622 = vmax.f32 %v588, 0.0
      %v623 = vld [vmem:[%s3] sm:$0x1]
      %v625 = vlaneseq
      %v626 = vshrl.u32 %v625, 7
      %v627 = vsub.s32 0, %v626
      %v628 = vrot.slane %v623, %v627
      %v630 = vmul.f32 %v591, %v628
      %v631 = vmul.f32 %v592, %v628
      %v632 = vmul.f32 %v593, %v628
      %v633 = vmul.f32 %v594, %v628
      %v634 = vmul.f32 %v595, %v628
      %v635 = vmul.f32 %v596, %v628
      %v636 = vmul.f32 %v597, %v628
      %v637 = vmul.f32 %v598, %v628
      %v638 = vmul.f32 %v599, %v628
      %v639 = vmul.f32 %v600, %v628
      %v640 = vmul.f32 %v601, %v628
      %v641 = vmul.f32 %v602, %v628
      %v642 = vmul.f32 %v603, %v628
      %v643 = vmul.f32 %v604, %v628
      %v644 = vmul.f32 %v605, %v628
      %v645 = vmul.f32 %v606, %v628
      %v646 = vmul.f32 %v607, %v628
      %v647 = vmul.f32 %v608, %v628
      %v648 = vmul.f32 %v609, %v628
      %v649 = vmul.f32 %v610, %v628
      %v650 = vmul.f32 %v611, %v628
      %v651 = vmul.f32 %v612, %v628
      %v652 = vmul.f32 %v613, %v628
      %v653 = vmul.f32 %v614, %v628
      %v654 = vmul.f32 %v615, %v628
      %v655 = vmul.f32 %v616, %v628
      %v656 = vmul.f32 %v617, %v628
      %v657 = vmul.f32 %v618, %v628
      %v658 = vmul.f32 %v619, %v628
      %v659 = vmul.f32 %v620, %v628
      %v660 = vmul.f32 %v621, %v628
      %v661 = vmul.f32 %v622, %v628
      %662 = vadd.xlane.f32.xlu0 %v630
      %v663 = vpop.xlane.xlu0 %662
      %664 = vadd.xlane.f32.xlu0 %v631
      %v665 = vpop.xlane.xlu0 %664
      %666 = vadd.xlane.f32.xlu0 %v632
      %v667 = vpop.xlane.xlu0 %666
      %668 = vadd.xlane.f32.xlu0 %v633
      %v669 = vpop.xlane.xlu0 %668
      %670 = vadd.xlane.f32.xlu0 %v634
      %v671 = vpop.xlane.xlu0 %670
      %672 = vadd.xlane.f32.xlu0 %v635
      %v673 = vpop.xlane.xlu0 %672
      %674 = vadd.xlane.f32.xlu0 %v636
      %v675 = vpop.xlane.xlu0 %674
      %676 = vadd.xlane.f32.xlu0 %v637
      %v677 = vpop.xlane.xlu0 %676
      %678 = vadd.xlane.f32.xlu0 %v638
      %v679 = vpop.xlane.xlu0 %678
      %680 = vadd.xlane.f32.xlu0 %v639
      %v681 = vpop.xlane.xlu0 %680
      %682 = vadd.xlane.f32.xlu0 %v640
      %v683 = vpop.xlane.xlu0 %682
      %684 = vadd.xlane.f32.xlu0 %v641
      %v685 = vpop.xlane.xlu0 %684
      %686 = vadd.xlane.f32.xlu0 %v642
      %v687 = vpop.xlane.xlu0 %686
      %688 = vadd.xlane.f32.xlu0 %v643
      %v689 = vpop.xlane.xlu0 %688
      %690 = vadd.xlane.f32.xlu0 %v644
      %v691 = vpop.xlane.xlu0 %690
      %692 = vadd.xlane.f32.xlu0 %v645
      %v693 = vpop.xlane.xlu0 %692
      %694 = vadd.xlane.f32.xlu0 %v646
      %v695 = vpop.xlane.xlu0 %694
      %696 = vadd.xlane.f32.xlu0 %v647
      %v697 = vpop.xlane.xlu0 %696
      %698 = vadd.xlane.f32.xlu0 %v648
      %v699 = vpop.xlane.xlu0 %698
      %700 = vadd.xlane.f32.xlu0 %v649
      %v701 = vpop.xlane.xlu0 %700
      %702 = vadd.xlane.f32.xlu0 %v650
      %v703 = vpop.xlane.xlu0 %702
      %704 = vadd.xlane.f32.xlu0 %v651
      %v705 = vpop.xlane.xlu0 %704
      %706 = vadd.xlane.f32.xlu0 %v652
      %v707 = vpop.xlane.xlu0 %706
      %708 = vadd.xlane.f32.xlu0 %v653
      %v709 = vpop.xlane.xlu0 %708
      %710 = vadd.xlane.f32.xlu0 %v654
      %v711 = vpop.xlane.xlu0 %710
      %712 = vadd.xlane.f32.xlu0 %v655
      %v713 = vpop.xlane.xlu0 %712
      %714 = vadd.xlane.f32.xlu0 %v656
      %v715 = vpop.xlane.xlu0 %714
      %716 = vadd.xlane.f32.xlu0 %v657
      %v717 = vpop.xlane.xlu0 %716
      %718 = vadd.xlane.f32.xlu0 %v658
      %v719 = vpop.xlane.xlu0 %718
      %720 = vadd.xlane.f32.xlu0 %v659
      %v721 = vpop.xlane.xlu0 %720
      %722 = vadd.xlane.f32.xlu0 %v660
      %v723 = vpop.xlane.xlu0 %722
      %724 = vadd.xlane.f32.xlu0 %v661
      %v725 = vpop.xlane.xlu0 %724
      %s726 = sld [smem:[#allocation2]]
      %v727 = vstv %s726
      %v728 = vadd.f32 %v663, %v727
      %v729 = vadd.f32 %v665, %v727
      %v730 = vadd.f32 %v667, %v727
      %v731 = vadd.f32 %v669, %v727
      %v732 = vadd.f32 %v671, %v727
      %v733 = vadd.f32 %v673, %v727
      %v734 = vadd.f32 %v675, %v727
      %v735 = vadd.f32 %v677, %v727
      %v736 = vadd.f32 %v679, %v727
      %v737 = vadd.f32 %v681, %v727
      %v738 = vadd.f32 %v683, %v727
      %v739 = vadd.f32 %v685, %v727
      %v740 = vadd.f32 %v687, %v727
      %v741 = vadd.f32 %v689, %v727
      %v742 = vadd.f32 %v691, %v727
      %v743 = vadd.f32 %v693, %v727
      %v744 = vadd.f32 %v695, %v727
      %v745 = vadd.f32 %v697, %v727
      %v746 = vadd.f32 %v699, %v727
      %v747 = vadd.f32 %v701, %v727
      %v748 = vadd.f32 %v703, %v727
      %v749 = vadd.f32 %v705, %v727
      %v750 = vadd.f32 %v707, %v727
      %v751 = vadd.f32 %v709, %v727
      %v752 = vadd.f32 %v711, %v727
      %v753 = vadd.f32 %v713, %v727
      %v754 = vadd.f32 %v715, %v727
      %v755 = vadd.f32 %v717, %v727
      %v756 = vadd.f32 %v719, %v727
      %v757 = vadd.f32 %v721, %v727
      %v758 = vadd.f32 %v723, %v727
      %v759 = vadd.f32 %v725, %v727
      %v760 = vxor.u32 %v728, 2147483648
      %v761 = vxor.u32 %v729, 2147483648
      %v762 = vxor.u32 %v730, 2147483648
      %v763 = vxor.u32 %v731, 2147483648
      %v764 = vxor.u32 %v732, 2147483648
      %v765 = vxor.u32 %v733, 2147483648
      %v766 = vxor.u32 %v734, 2147483648
      %v767 = vxor.u32 %v735, 2147483648
      %v768 = vxor.u32 %v736, 2147483648
      %v769 = vxor.u32 %v737, 2147483648
      %v770 = vxor.u32 %v738, 2147483648
      %v771 = vxor.u32 %v739, 2147483648
      %v772 = vxor.u32 %v740, 2147483648
      %v773 = vxor.u32 %v741, 2147483648
      %v774 = vxor.u32 %v742, 2147483648
      %v775 = vxor.u32 %v743, 2147483648
      %v776 = vxor.u32 %v744, 2147483648
      %v777 = vxor.u32 %v745, 2147483648
      %v778 = vxor.u32 %v746, 2147483648
      %v779 = vxor.u32 %v747, 2147483648
      %v780 = vxor.u32 %v748, 2147483648
      %v781 = vxor.u32 %v749, 2147483648
      %v782 = vxor.u32 %v750, 2147483648
      %v783 = vxor.u32 %v751, 2147483648
      %v784 = vxor.u32 %v752, 2147483648
      %v785 = vxor.u32 %v753, 2147483648
      %v786 = vxor.u32 %v754, 2147483648
      %v787 = vxor.u32 %v755, 2147483648
      %v788 = vxor.u32 %v756, 2147483648
      %v789 = vxor.u32 %v757, 2147483648
      %v790 = vxor.u32 %v758, 2147483648
      %v791 = vxor.u32 %v759, 2147483648
      %v792 = vmul.f32 %v760, 1.442695
      %v793 = vpow.pop %v792
      %v794 = vmul.f32 %v761, 1.442695
      %v795 = vpow.pop %v794
      %v796 = vmul.f32 %v762, 1.442695
      %v797 = vpow.pop %v796
      %v798 = vmul.f32 %v763, 1.442695
      %v799 = vpow.pop %v798
      %v800 = vmul.f32 %v764, 1.442695
      %v801 = vpow.pop %v800
      %v802 = vmul.f32 %v765, 1.442695
      %v803 = vpow.pop %v802
      %v804 = vmul.f32 %v766, 1.442695
      %v805 = vpow.pop %v804
      %v806 = vmul.f32 %v767, 1.442695
      %v807 = vpow.pop %v806
      %v808 = vmul.f32 %v768, 1.442695
      %v809 = vpow.pop %v808
      %v810 = vmul.f32 %v769, 1.442695
      %v811 = vpow.pop %v810
      %v812 = vmul.f32 %v770, 1.442695
      %v813 = vpow.pop %v812
      %v814 = vmul.f32 %v771, 1.442695
      %v815 = vpow.pop %v814
      %v816 = vmul.f32 %v772, 1.442695
      %v817 = vpow.pop %v816
      %v818 = vmul.f32 %v773, 1.442695
      %v819 = vpow.pop %v818
      %v820 = vmul.f32 %v774, 1.442695
      %v821 = vpow.pop %v820
      %v822 = vmul.f32 %v775, 1.442695
      %v823 = vpow.pop %v822
      %v824 = vmul.f32 %v776, 1.442695
      %v825 = vpow.pop %v824
      %v826 = vmul.f32 %v777, 1.442695
      %v827 = vpow.pop %v826
      %v828 = vmul.f32 %v778, 1.442695
      %v829 = vpow.pop %v828
      %v830 = vmul.f32 %v779, 1.442695
      %v831 = vpow.pop %v830
      %v832 = vmul.f32 %v780, 1.442695
      %v833 = vpow.pop %v832
      %v834 = vmul.f32 %v781, 1.442695
      %v835 = vpow.pop %v834
      %v836 = vmul.f32 %v782, 1.442695
      %v837 = vpow.pop %v836
      %v838 = vmul.f32 %v783, 1.442695
      %v839 = vpow.pop %v838
      %v840 = vmul.f32 %v784, 1.442695
      %v841 = vpow.pop %v840
      %v842 = vmul.f32 %v785, 1.442695
      %v843 = vpow.pop %v842
      %v844 = vmul.f32 %v786, 1.442695
      %v845 = vpow.pop %v844
      %v846 = vmul.f32 %v787, 1.442695
      %v847 = vpow.pop %v846
      %v848 = vmul.f32 %v788, 1.442695
      %v849 = vpow.pop %v848
      %v850 = vmul.f32 %v789, 1.442695
      %v851 = vpow.pop %v850
      %v852 = vmul.f32 %v790, 1.442695
      %v853 = vpow.pop %v852
      %v854 = vmul.f32 %v791, 1.442695
      %v855 = vpow.pop %v854
      %v856 = vadd.f32 %v793, 1.0
      %v857 = vadd.f32 %v795, 1.0
      %v858 = vadd.f32 %v797, 1.0
      %v859 = vadd.f32 %v799, 1.0
      %v860 = vadd.f32 %v801, 1.0
      %v861 = vadd.f32 %v803, 1.0
      %v862 = vadd.f32 %v805, 1.0
      %v863 = vadd.f32 %v807, 1.0
      %v864 = vadd.f32 %v809, 1.0
      %v865 = vadd.f32 %v811, 1.0
      %v866 = vadd.f32 %v813, 1.0
      %v867 = vadd.f32 %v815, 1.0
      %v868 = vadd.f32 %v817, 1.0
      %v869 = vadd.f32 %v819, 1.0
      %v870 = vadd.f32 %v821, 1.0
      %v871 = vadd.f32 %v823, 1.0
      %v872 = vadd.f32 %v825, 1.0
      %v873 = vadd.f32 %v827, 1.0
      %v874 = vadd.f32 %v829, 1.0
      %v875 = vadd.f32 %v831, 1.0
      %v876 = vadd.f32 %v833, 1.0
      %v877 = vadd.f32 %v835, 1.0
      %v878 = vadd.f32 %v837, 1.0
      %v879 = vadd.f32 %v839, 1.0
      %v880 = vadd.f32 %v841, 1.0
      %v881 = vadd.f32 %v843, 1.0
      %v882 = vadd.f32 %v845, 1.0
      %v883 = vadd.f32 %v847, 1.0
      %v884 = vadd.f32 %v849, 1.0
      %v885 = vadd.f32 %v851, 1.0
      %v886 = vadd.f32 %v853, 1.0
      %v887 = vadd.f32 %v855, 1.0
      %v888 = vrcp.pop %v856
      %v889 = vmul.f32 1.0, %v888
      %v890 = vrcp.pop %v857
      %v891 = vmul.f32 1.0, %v890
      %v892 = vrcp.pop %v858
      %v893 = vmul.f32 1.0, %v892
      %v894 = vrcp.pop %v859
      %v895 = vmul.f32 1.0, %v894
      %v896 = vrcp.pop %v860
      %v897 = vmul.f32 1.0, %v896
      %v898 = vrcp.pop %v861
      %v899 = vmul.f32 1.0, %v898
      %v900 = vrcp.pop %v862
      %v901 = vmul.f32 1.0, %v900
      %v902 = vrcp.pop %v863
      %v903 = vmul.f32 1.0, %v902
      %v904 = vrcp.pop %v864
      %v905 = vmul.f32 1.0, %v904
      %v906 = vrcp.pop %v865
      %v907 = vmul.f32 1.0, %v906
      %v908 = vrcp.pop %v866
      %v909 = vmul.f32 1.0, %v908
      %v910 = vrcp.pop %v867
      %v911 = vmul.f32 1.0, %v910
      %v912 = vrcp.pop %v868
      %v913 = vmul.f32 1.0, %v912
      %v914 = vrcp.pop %v869
      %v915 = vmul.f32 1.0, %v914
      %v916 = vrcp.pop %v870
      %v917 = vmul.f32 1.0, %v916
      %v918 = vrcp.pop %v871
      %v919 = vmul.f32 1.0, %v918
      %v920 = vrcp.pop %v872
      %v921 = vmul.f32 1.0, %v920
      %v922 = vrcp.pop %v873
      %v923 = vmul.f32 1.0, %v922
      %v924 = vrcp.pop %v874
      %v925 = vmul.f32 1.0, %v924
      %v926 = vrcp.pop %v875
      %v927 = vmul.f32 1.0, %v926
      %v928 = vrcp.pop %v876
      %v929 = vmul.f32 1.0, %v928
      %v930 = vrcp.pop %v877
      %v931 = vmul.f32 1.0, %v930
      %v932 = vrcp.pop %v878
      %v933 = vmul.f32 1.0, %v932
      %v934 = vrcp.pop %v879
      %v935 = vmul.f32 1.0, %v934
      %v936 = vrcp.pop %v880
      %v937 = vmul.f32 1.0, %v936
      %v938 = vrcp.pop %v881
      %v939 = vmul.f32 1.0, %v938
      %v940 = vrcp.pop %v882
      %v941 = vmul.f32 1.0, %v940
      %v942 = vrcp.pop %v883
      %v943 = vmul.f32 1.0, %v942
      %v944 = vrcp.pop %v884
      %v945 = vmul.f32 1.0, %v944
      %v946 = vrcp.pop %v885
      %v947 = vmul.f32 1.0, %v946
      %v948 = vrcp.pop %v886
      %v949 = vmul.f32 1.0, %v948
      %v950 = vrcp.pop %v887
      %v951 = vmul.f32 1.0, %v950
      %vm952 = vcmask 7168
      %953 = vst.msk [vmem:[%s227] sm:$0xff] %vm952, %v889
      %954 = vst.msk [vmem:[%s227 + $0x8] sm:$0xff] %vm952, %v891
      %955 = vst.msk [vmem:[%s227 + $0x10] sm:$0xff] %vm952, %v893
      %956 = vst.msk [vmem:[%s227 + $0x18] sm:$0xff] %vm952, %v895
      %957 = vst.msk [vmem:[%s227 + $0x20] sm:$0xff] %vm952, %v897
      %958 = vst.msk [vmem:[%s227 + $0x28] sm:$0xff] %vm952, %v899
      %959 = vst.msk [vmem:[%s227 + $0x30] sm:$0xff] %vm952, %v901
      %960 = vst.msk [vmem:[%s227 + $0x38] sm:$0xff] %vm952, %v903
      %961 = vst.msk [vmem:[%s227 + $0x40] sm:$0xff] %vm952, %v905
      %962 = vst.msk [vmem:[%s227 + $0x48] sm:$0xff] %vm952, %v907
      %963 = vst.msk [vmem:[%s227 + $0x50] sm:$0xff] %vm952, %v909
      %964 = vst.msk [vmem:[%s227 + $0x58] sm:$0xff] %vm952, %v911
      %965 = vst.msk [vmem:[%s227 + $0x60] sm:$0xff] %vm952, %v913
      %966 = vst.msk [vmem:[%s227 + $0x68] sm:$0xff] %vm952, %v915
      %967 = vst.msk [vmem:[%s227 + $0x70] sm:$0xff] %vm952, %v917
      %968 = vst.msk [vmem:[%s227 + $0x78] sm:$0xff] %vm952, %v919
      %969 = vst.msk [vmem:[%s227 + $0x80] sm:$0xff] %vm952, %v921
      %970 = vst.msk [vmem:[%s227 + $0x88] sm:$0xff] %vm952, %v923
      %971 = vst.msk [vmem:[%s227 + $0x90] sm:$0xff] %vm952, %v925
      %972 = vst.msk [vmem:[%s227 + $0x98] sm:$0xff] %vm952, %v927
      %973 = vst.msk [vmem:[%s227 + $0xa0] sm:$0xff] %vm952, %v929
      %974 = vst.msk [vmem:[%s227 + $0xa8] sm:$0xff] %vm952, %v931
      %975 = vst.msk [vmem:[%s227 + $0xb0] sm:$0xff] %vm952, %v933
      %976 = vst.msk [vmem:[%s227 + $0xb8] sm:$0xff] %vm952, %v935
      %977 = vst.msk [vmem:[%s227 + $0xc0] sm:$0xff] %vm952, %v937
      %978 = vst.msk [vmem:[%s227 + $0xc8] sm:$0xff] %vm952, %v939
      %979 = vst.msk [vmem:[%s227 + $0xd0] sm:$0xff] %vm952, %v941
      %980 = vst.msk [vmem:[%s227 + $0xd8] sm:$0xff] %vm952, %v943
      %981 = vst.msk [vmem:[%s227 + $0xe0] sm:$0xff] %vm952, %v945
      %982 = vst.msk [vmem:[%s227 + $0xe8] sm:$0xff] %vm952, %v947
      %983 = vst.msk [vmem:[%s227 + $0xf0] sm:$0xff] %vm952, %v949
      %984 = vst.msk [vmem:[%s227 + $0xf8] sm:$0xff] %vm952, %v951
      %s985 = smul.u32 32, %s17
      %p986 = scmp.lt.s32.totalorder %s985, 63
      %s987 = scalar_select %p986, %s985, 63
      %s988 = smul.addr %s987, 8
      %s989 = scalar_lea.vmem %s5, %s988
      // Predicated region
      $region41: #{tpu_custom_call.1} parent=39 // pred_check
        %p990 = pneg %p145
      $region42: #{tpu_custom_call.1} parent=39 // pred_check_branch
        %992 = sbr.rel (%p990) target = $region44
      $region43: #{tpu_custom_call.1} parent=39 // pred_region
        %s993 = smul.u32 32, %s17
      $region44: #{tpu_custom_call.1} parent=39 // pred_fallthru
        _
    $region40: #{tpu_custom_call.1} parent=5 // pred_fallthru
      _
    %p994 = scmp.le.s32.totalorder 2, %s12
    // Predicated region
    $region45: #{tpu_custom_call.1} parent=5 // pred_check
      %p995 = pneg %p994
    $region46: #{tpu_custom_call.1} parent=5 // pred_check_branch
      %997 = sbr.rel (%p995) target = $region48
    $region47: #{tpu_custom_call.1} parent=5 // pred_region
      %s998 = ssub.s32 %s12, 2
      // Predicated region
      $region49: #{tpu_custom_call.1} parent=47 // pred_check
        %p999 = pneg %p151
      $region50: #{tpu_custom_call.1} parent=47 // pred_check_branch
        %1001 = sbr.rel (%p999) target = $region52
      $region51: #{tpu_custom_call.1} parent=47 // pred_region
        %s1002 = smul.u32 32, %s18
        %p1003 = scmp.lt.s32.totalorder %s1002, 63
        %s1004 = scalar_select %p1003, %s1002, 63
        %s1005 = smul.addr %s1004, 8
        %s1006 = scalar_lea.vmem %s5, %s1005
      $region52: #{tpu_custom_call.1} parent=47 // pred_fallthru
        _
    $region48: #{tpu_custom_call.1} parent=5 // pred_fallthru
      _
  $region6: #{tpu_custom_call.1} parent=0 // loop_footer
    %s16 = sadd.s32 1, %s12
  $region7: #{tpu_custom_call.1} parent=0 // loop_footer_branch
    %11 = sbr.rel target = $region3
  $region8: #{tpu_custom_call.1} parent=0 // loop_exit
    _

</llo_original>
